<compile_context>
chip_gen: v6e
topology: v6e:2x2x1
jax: 0.10.0
libtpu: 0.0.40
codegen_flags: <defaults>
</compile_context>

<pallas_src>
import jax
import jax.numpy as jnp
from jax import lax
from jax.experimental import pallas as pl
from jax.experimental.pallas import tpu as pltpu


_VMEM_LIMIT = 48 * 1024 * 1024        # < v7x 64 MiB physical, raises v5e's 16 MiB scoped default


# --------------------------------------------------------------------------------------
# small helpers
# --------------------------------------------------------------------------------------
def _choose_fold(rows, c):
    """Pack `fold` consecutive C-rows into the 128-lane axis (free row-major view)."""
    fold = 1
    if c <= 128 and 128 % c == 0:
        fold = 128 // c
    while fold > 1 and rows % fold != 0:
        fold //= 2
    return fold


def _choose_tile_rows(rows, row_bytes, target_bytes):
    """~target_bytes per input block; multiple of 8 sublanes; ragged tail masked by Pallas."""
    target = max(8, target_bytes // max(row_bytes, 1))
    if rows <= target:
        return rows
    return max(8, (target // 8) * 8)


def _block_diag(w, fold):
    """(C, N) -> (fold*C, fold*N) block-diagonal replication (per-original-row projection)."""
    if fold == 1:
        return w
    c, n = w.shape
    eye = jnp.eye(fold, dtype=w.dtype)
    return (eye[:, None, :, None] * w[None, :, None, :]).reshape(fold * c, fold * n)


def _same_block_mask(n, block):
    """(n, n) bool mask, True where row and column fall in the same `block`-sized segment.
    Built from iota + float-floor compare (avoids vector integer division)."""
    r = lax.broadcasted_iota(jnp.int32, (n, n), 0).astype(jnp.float32)
    col = lax.broadcasted_iota(jnp.int32, (n, n), 1).astype(jnp.float32)
    inv = 1.0 / block
    return jnp.floor((r + 0.5) * inv) == jnp.floor((col + 0.5) * inv)


# exact GELU via Abramowitz & Stegun 7.1.26 erf (|err| <= 1.5e-7; only mul/add/exp)
_A1, _A2, _A3, _A4, _A5 = 0.254829592, -0.284496736, 1.421413741, -1.453152027, 1.061405429
_P_ERF = 0.3275911
_SQRT_HALF = 0.7071067811865476


def _erf_f32(x):
    s = jnp.where(x >= 0.0, 1.0, -1.0)
    z = jnp.abs(x)
    t = 1.0 / (1.0 + _P_ERF * z)
    poly = ((((_A5 * t + _A4) * t + _A3) * t + _A2) * t + _A1) * t
    return s * (1.0 - poly * jnp.exp(-z * z))


def _gelu_exact(x):
    return 0.5 * x * (1.0 + _erf_f32(x * _SQRT_HALF))


# --------------------------------------------------------------------------------------
# Kernel A / B: fused WithBias LayerNorm + one-or-more bias-free 1x1 projections
# --------------------------------------------------------------------------------------
def _make_ln_proj_kernel(c, n_proj):
    inv_c = 1.0 / c

    def kernel(*refs):
        x_ref, g_ref, b_ref = refs[:3]
        w_refs = refs[3:3 + n_proj]
        o_refs = refs[3 + n_proj:]
        x = x_ref[...].astype(jnp.float32)                 # (tile, cf) lane-dense
        cf = x.shape[-1]
        seg = _same_block_mask(cf, c).astype(jnp.float32)  # block-diag ones, built in-kernel
        # segmented mean/var on the (otherwise idle) MXU, f32 accumulation
        mu = jnp.dot(x, seg, preferred_element_type=jnp.float32) * inv_c
        xc = x - mu
        var = jnp.dot(xc * xc, seg, preferred_element_type=jnp.float32) * inv_c
        y = (xc * lax.rsqrt(var + 1e-5) * g_ref[...].astype(jnp.float32)
             + b_ref[...].astype(jnp.float32))
        for w_ref, o_ref in zip(w_refs, o_refs):
            yc = y.astype(w_ref.dtype)                     # native MXU dtype (bf16 stays bf16)
            o_ref[...] = jnp.dot(yc, w_ref[...],
                                 preferred_element_type=jnp.float32).astype(o_ref.dtype)

    return kernel


def ln_project(x2, gamma, beta, weights, *, target_bytes=2 << 20):
    """Fused WithBias_LayerNorm over the last dim followed by bias-free 1x1 projections.
    x2: (rows, C); weights: list of (C, N_i). Returns a tuple of (rows, N_i) arrays."""
    rows, c = x2.shape
    fold = _choose_fold(rows, c)
    cf = c * fold
    rows_f = rows // fold
    xf = x2.reshape(rows_f, cf)
    gf = jnp.tile(gamma.reshape(-1), fold).reshape(1, cf)
    bf = jnp.tile(beta.reshape(-1), fold).reshape(1, cf)
    wfs = [_block_diag(w, fold) for w in weights]
    nfs = [w.shape[1] * fold for w in weights]

    itemsize = jnp.dtype(x2.dtype).itemsize
    tile = _choose_tile_rows(rows_f, cf * itemsize, target_bytes)
    grid = (pl.cdiv(rows_f, tile),)

    in_specs = [pl.BlockSpec((tile, cf), lambda i: (i, 0)),
                pl.BlockSpec((1, cf), lambda i: (0, 0)),
                pl.BlockSpec((1, cf), lambda i: (0, 0))]
    in_specs += [pl.BlockSpec((cf, nf), lambda i: (0, 0)) for nf in nfs]
    out_specs = tuple(pl.BlockSpec((tile, nf), lambda i: (i, 0)) for nf in nfs)
    out_shape = tuple(jax.ShapeDtypeStruct((rows_f, nf), x2.dtype) for nf in nfs)

    flops = rows_f * (4 * cf * cf + sum(2 * cf * nf for nf in nfs)) + 8 * rows * c
    bytes_accessed = itemsize * (rows_f * cf + rows_f * sum(nfs)
                                 + cf * sum(nfs) + 2 * cf)

    outs = pl.pallas_call(
        _make_ln_proj_kernel(c, len(weights)),
        out_shape=out_shape,
        grid=grid,
        in_specs=in_specs,
        out_specs=out_specs,
        compiler_params=pltpu.CompilerParams(
            dimension_semantics=("parallel",),
            vmem_limit_bytes=_VMEM_LIMIT),
        cost_estimate=pl.CostEstimate(flops=flops, transcendentals=rows,
                                      bytes_accessed=bytes_accessed),
    )(xf, gf, bf, *wfs)
    if not isinstance(outs, (list, tuple)):
        outs = (outs,)
    return tuple(o.reshape(rows, w.shape[1]) for o, w in zip(outs, weights))


# --------------------------------------------------------------------------------------
# Kernel C: Mutual_Attention core, directly in (hw, c) layout (no head transposes)
# --------------------------------------------------------------------------------------
def _make_attn_kernel(num_heads):
    def kernel(q_ref, k_ref, v_ref, t_ref, o_ref):
        q = q_ref[...].astype(jnp.float32)      # (hw, c)
        k = k_ref[...].astype(jnp.float32)
        v = v_ref[...].astype(jnp.float32)
        c = q.shape[-1]
        ch = c // num_heads
        # F.normalize over the spatial (hw) axis, eps = 1e-12
        qn = q * lax.rsqrt(jnp.maximum(jnp.sum(q * q, axis=0, keepdims=True), 1e-24))
        kn = k * lax.rsqrt(jnp.maximum(jnp.sum(k * k, axis=0, keepdims=True), 1e-24))
        # channel-attention logits (c, c): contract over the hw (sublane) axis = q @ k^T
        logits = lax.dot_general(qn, kn, (((0,), (0,)), ((), ())),
                                 preferred_element_type=jnp.float32)
        logits = logits * t_ref[...].astype(jnp.float32)   # per-head temperature (row vector)
        head_mask = _same_block_mask(c, ch)                 # per-head block-diagonal structure
        logits = jnp.where(head_mask, logits, -1e30)
        logits = logits - jnp.max(logits, axis=-1, keepdims=True)
        p = jnp.exp(logits)
        attn = p / jnp.sum(p, axis=-1, keepdims=True)
        # output stays (hw, c): out = v @ attn^T (off-head attn entries are exactly 0)
        out = lax.dot_general(v, attn, (((1,), (1,)), ((), ())),
                              preferred_element_type=jnp.float32)
        o_ref[...] = out.astype(o_ref.dtype)

    return kernel


def mutual_attention_core(q3, k3, v3, temperature, b, num_heads):
    """q3/k3/v3: (b*hw, c) channels-last. Returns the pre-project_out attention output."""
    rows, c = q3.shape
    hw = rows // b
    ch = c // num_heads
    t_vec = jnp.repeat(temperature.reshape(num_heads), ch).reshape(1, c)
    qb, kb, vb = (z.reshape(b, hw, c) for z in (q3, k3, v3))

    # TODO(synk): for very large feature maps (hw*c blocks beyond VMEM) chunk the hw axis:
    #   pass 1 accumulates ||q||^2, ||k||^2 and q@k^T per chunk, pass 2 streams v chunks.
    blk = pl.BlockSpec((None, hw, c), lambda i: (i, 0, 0))
    itemsize = jnp.dtype(q3.dtype).itemsize
    flops = b * (4 * hw * c * c + 10 * hw * c + 6 * c * c)

    out = pl.pallas_call(
        _make_attn_kernel(num_heads),
        out_shape=jax.ShapeDtypeStruct((b, hw, c), q3.dtype),
        grid=(b,),
        in_specs=[blk, blk, blk, pl.BlockSpec((1, c), lambda i: (0, 0))],
        out_specs=pl.BlockSpec((None, hw, c), lambda i: (i, 0, 0)),
        compiler_params=pltpu.CompilerParams(
            dimension_semantics=("parallel",),
            vmem_limit_bytes=_VMEM_LIMIT),
        cost_estimate=pl.CostEstimate(flops=flops,
                                      transcendentals=b * (2 * c + c * c),
                                      bytes_accessed=itemsize * 4 * b * hw * c),
    )(qb, kb, vb, t_vec)
    return out.reshape(rows, c)


# --------------------------------------------------------------------------------------
# Kernel D: project_out (1x1) + residual + nn.LayerNorm + Mlp (fc1 -> GELU -> fc2) + residual
# --------------------------------------------------------------------------------------
def _make_proj_ln_mlp_kernel(c):
    inv_c = 1.0 / c

    def kernel(a_ref, x_ref, g_ref, b_ref, wp_ref, w1_ref, b1_ref, w2_ref, b2_ref, o_ref):
        x = x_ref[...].astype(jnp.float32)          # residual base (to_3d image), (tile, cf)
        a = a_ref[...]                              # attention output, native dtype
        cf = x.shape[-1]
        # project_out (1x1, block-diagonal in fold layout) + residual add
        fused = x + jnp.dot(a.astype(wp_ref.dtype), wp_ref[...],
                            preferred_element_type=jnp.float32)
        # nn.LayerNorm(dim): eps = 1e-5, biased variance; segmented sums on the MXU
        seg = _same_block_mask(cf, c).astype(jnp.float32)
        mu = jnp.dot(fused, seg, preferred_element_type=jnp.float32) * inv_c
        fc = fused - mu
        var = jnp.dot(fc * fc, seg, preferred_element_type=jnp.float32) * inv_c
        y = (fc * lax.rsqrt(var + 1e-5) * g_ref[...].astype(jnp.float32)
             + b_ref[...].astype(jnp.float32))
        # Mlp: fc1 -> exact GELU -> fc2 (Dropout(p=0.0) is identity)
        h = jnp.dot(y.astype(w1_ref.dtype), w1_ref[...],
                    preferred_element_type=jnp.float32) + b1_ref[...].astype(jnp.float32)
        h = _gelu_exact(h)
        z = jnp.dot(h.astype(w2_ref.dtype), w2_ref[...],
                    preferred_element_type=jnp.float32) + b2_ref[...].astype(jnp.float32)
        o_ref[...] = (fused + z).astype(o_ref.dtype)

    return kernel


def proj_residual_ln_mlp(attn3, img3, wproj, gamma, beta, w1, b1, w2, b2,
                         *, target_bytes=1 << 20):
    rows, c = img3.shape
    hidden = w1.shape[1]
    fold = _choose_fold(rows, c)
    cf = c * fold
    hf = hidden * fold
    rows_f = rows // fold

    af = attn3.reshape(rows_f, cf)
    xf = img3.reshape(rows_f, cf)
    gf = jnp.tile(gamma.reshape(-1), fold).reshape(1, cf)
    bf = jnp.tile(beta.reshape(-1), fold).reshape(1, cf)
    wp_bd = _block_diag(wproj, fold)
    w1_bd = _block_diag(w1, fold)
    w2_bd = _block_diag(w2, fold)
    b1_t = jnp.tile(b1.reshape(-1), fold).reshape(1, hf)
    b2_t = jnp.tile(b2.reshape(-1), fold).reshape(1, cf)

    itemsize = jnp.dtype(img3.dtype).itemsize
    tile = _choose_tile_rows(rows_f, cf * itemsize, target_bytes)
    grid = (pl.cdiv(rows_f, tile),)

    def row_spec(width):
        return pl.BlockSpec((tile, width), lambda i: (i, 0))

    def fix_spec(shape):
        return pl.BlockSpec(shape, lambda i: (0, 0))

    flops = rows_f * (6 * cf * cf + 4 * cf * hf) + 40 * rows_f * (cf + hf)
    bytes_accessed = itemsize * (3 * rows_f * cf + 2 * cf * cf + 2 * cf * hf + 2 * cf + hf)

    out = pl.pallas_call(
        _make_proj_ln_mlp_kernel(c),
        out_shape=jax.ShapeDtypeStruct((rows_f, cf), img3.dtype),
        grid=grid,
        in_specs=[row_spec(cf), row_spec(cf),
                  fix_spec((1, cf)), fix_spec((1, cf)),
                  fix_spec((cf, cf)), fix_spec((cf, hf)), fix_spec((1, hf)),
                  fix_spec((hf, cf)), fix_spec((1, cf))],
        out_specs=row_spec(cf),
        compiler_params=pltpu.CompilerParams(
            dimension_semantics=("parallel",),
            vmem_limit_bytes=_VMEM_LIMIT),
        cost_estimate=pl.CostEstimate(flops=flops,
                                      transcendentals=rows_f * (1 + hf),
                                      bytes_accessed=bytes_accessed),
    )(af, xf, gf, bf, wp_bd, w1_bd, b1_t, w2_bd, b2_t)
    return out.reshape(rows, c)


# --------------------------------------------------------------------------------------
# depthwise 3x3 conv (dq / dk / dv)
# --------------------------------------------------------------------------------------
def depthwise_conv3x3(x_nhwc, w_hwio, b):
    # TODO(synk): depthwise 3x3 stays on XLA's grouped conv; a Pallas version needs an
    # H/W-aware BlockSpec with halo rows to fuse it into the surrounding kernels.
    out = lax.conv_general_dilated(
        x_nhwc, w_hwio, window_strides=(1, 1), padding=((1, 1), (1, 1)),
        dimension_numbers=("NHWC", "HWIO", "NHWC"),
        feature_group_count=x_nhwc.shape[-1])
    return out + b


# --------------------------------------------------------------------------------------
# IFCA forward (Pallas-backed)
# --------------------------------------------------------------------------------------
def ifca_forward(image, flow, p, num_heads):
    """image, flow: (b, c, h, w) -> (b, c, h, w)."""
    b, c, h, w = image.shape
    hw = h * w
    rows = b * hw

    # to_3d / channels-last (layout only; rearrange 'b c h w -> b (h w) c')
    img3 = jnp.transpose(image, (0, 2, 3, 1)).reshape(rows, c)
    flo3 = jnp.transpose(flow, (0, 2, 3, 1)).reshape(rows, c)

    # norm1 + q / (k, v) 1x1 projections, fused per branch (one HBM pass each)
    (q3,) = ln_project(img3, p["ln1_img_w"], p["ln1_img_b"], [p["wq"]])
    k3, v3 = ln_project(flo3, p["ln1_flow_w"], p["ln1_flow_b"], [p["wk"], p["wv"]])

    def dconv(z3, wkey, bkey):
        o = depthwise_conv3x3(z3.reshape(b, h, w, c), p[wkey], p[bkey])
        return o.reshape(rows, c)

    qd, kd, vd = dconv(q3, "dq_w", "dq_b"), dconv(k3, "dk_w", "dk_b"), dconv(v3, "dv_w", "dv_b")

    # mutual attention in (hw, c) layout (no head transposes), grid over the batch
    attn3 = mutual_attention_core(qd, kd, vd, p["temperature"], b, num_heads)

    # project_out + residual + LayerNorm + Mlp + residual, fused (one HBM pass)
    out3 = proj_residual_ln_mlp(attn3, img3, p["wproj"], p["ln2_w"], p["ln2_b"],
                                p["w1"], p["b1"], p["w2"], p["b2"])

    # to_4d
    return jnp.transpose(out3.reshape(b, h, w, c), (0, 3, 1, 2))


# --------------------------------------------------------------------------------------
# pure-JAX reference (mirrors the PyTorch math)
# --------------------------------------------------------------------------------------
def ifca_reference(image, flow, p, num_heads):
    b, c, h, w = image.shape
    hw = h * w
    ch = c // num_heads
    hp = lax.Precision.HIGHEST

    def ln(x, wgt, bias):
        mu = jnp.mean(x, -1, keepdims=True)
        var = jnp.mean((x - mu) ** 2, -1, keepdims=True)
        return (x - mu) / jnp.sqrt(var + 1e-5) * wgt + bias

    img3 = jnp.transpose(image, (0, 2, 3, 1)).reshape(b, hw, c)
    flo3 = jnp.transpose(flow, (0, 2, 3, 1)).reshape(b, hw, c)
    xn = ln(img3, p["ln1_img_w"], p["ln1_img_b"])
    yn = ln(flo3, p["ln1_flow_w"], p["ln1_flow_b"])

    def conv1x1(z, wmat):
        return jnp.einsum("bnc,cd->bnd", z, wmat, precision=hp)

    def dconv(z, wkey, bkey):
        o = lax.conv_general_dilated(
            z.reshape(b, h, w, c), p[wkey], (1, 1), ((1, 1), (1, 1)),
            dimension_numbers=("NHWC", "HWIO", "NHWC"), feature_group_count=c)
        return o + p[bkey]

    q = dconv(conv1x1(xn, p["wq"]), "dq_w", "dq_b")
    k = dconv(conv1x1(yn, p["wk"]), "dk_w", "dk_b")
    v = dconv(conv1x1(yn, p["wv"]), "dv_w", "dv_b")

    def to_heads(z):
        return jnp.transpose(z.reshape(b, hw, num_heads, ch), (0, 2, 3, 1))

    qh, kh, vh = to_heads(q), to_heads(k), to_heads(v)
    qn = qh / jnp.maximum(jnp.sqrt(jnp.sum(qh * qh, -1, keepdims=True)), 1e-12)
    kn = kh / jnp.maximum(jnp.sqrt(jnp.sum(kh * kh, -1, keepdims=True)), 1e-12)
    logits = jnp.einsum("bhcn,bhdn->bhcd", qn, kn, precision=hp) * p["temperature"]
    attn = jax.nn.softmax(logits, axis=-1)
    oh = jnp.einsum("bhcd,bhdn->bhcn", attn, vh, precision=hp)
    o3 = jnp.transpose(oh, (0, 3, 1, 2)).reshape(b, hw, c)
    attn_out = conv1x1(o3, p["wproj"])

    fused = img3 + attn_out
    f2 = ln(fused, p["ln2_w"], p["ln2_b"])
    hid = jax.nn.gelu(jnp.einsum("bnc,cd->bnd", f2, p["w1"], precision=hp) + p["b1"],
                      approximate=False)
    fused = fused + (jnp.einsum("bnd,dc->bnc", hid, p["w2"], precision=hp) + p["b2"])
    return jnp.transpose(fused.reshape(b, h, w, c), (0, 3, 1, 2))


if __name__ == "__main__":
    B, C, H, W = 2, 32, 16, 16
    NUM_HEADS = 4
    HIDDEN = C * 2                      # ffn_expansion_factor = 2

    key = jax.random.PRNGKey(0)
    ks = jax.random.split(key, 16)
    image = jax.random.normal(ks[0], (B, C, H, W), jnp.float32)
    flow = jax.random.normal(ks[1], (B, C, H, W), jnp.float32)

    def rnd(k, shape, scale=0.05):
        return scale * jax.random.normal(k, shape, jnp.float32)

    params = {
        "ln1_img_w": jnp.ones((C,), jnp.float32), "ln1_img_b": jnp.zeros((C,), jnp.float32),
        "ln1_flow_w": jnp.ones((C,), jnp.float32), "ln1_flow_b": jnp.zeros((C,), jnp.float32),
        "temperature": jnp.ones((NUM_HEADS, 1, 1), jnp.float32),
        "wq": rnd(ks[2], (C, C)), "wk": rnd(ks[3], (C, C)), "wv": rnd(ks[4], (C, C)),
        "dq_w": rnd(ks[5], (3, 3, 1, C)), "dq_b": rnd(ks[6], (C,)),
        "dk_w": rnd(ks[7], (3, 3, 1, C)), "dk_b": rnd(ks[8], (C,)),
        "dv_w": rnd(ks[9], (3, 3, 1, C)), "dv_b": rnd(ks[10], (C,)),
        "wproj": rnd(ks[11], (C, C)),
        "ln2_w": jnp.ones((C,), jnp.float32), "ln2_b": jnp.zeros((C,), jnp.float32),
        "w1": rnd(ks[12], (C, HIDDEN)), "b1": rnd(ks[13], (HIDDEN,)),
        "w2": rnd(ks[14], (HIDDEN, C)), "b2": rnd(ks[15], (C,)),
    }

    # Standalone check of the fused LayerNorm + projection kernel.
    x2 = jax.random.normal(ks[2], (B * H * W, C), jnp.float32)
    (yq,) = ln_project(x2, params["ln2_w"], params["ln2_b"], [params["wq"]])
    yq = jax.block_until_ready(yq)
    mu = jnp.mean(x2, -1, keepdims=True)
    var = jnp.mean((x2 - mu) ** 2, -1, keepdims=True)
    ref_ln = (x2 - mu) / jnp.sqrt(var + 1e-5) * params["ln2_w"] + params["ln2_b"]
    ref_q = jnp.einsum("rc,cd->rd", ref_ln, params["wq"], precision=lax.Precision.HIGHEST)
    assert float(jnp.max(jnp.abs(yq - ref_q))) < 5e-3, "ln_project kernel mismatch"

    # Full IFCA forward vs pure-JAX reference.
    out = jax.block_until_ready(ifca_forward(image, flow, params, NUM_HEADS))
    ref = jax.block_until_ready(ifca_reference(image, flow, params, NUM_HEADS))
    assert out.shape == (B, C, H, W)
    err = float(jnp.max(jnp.abs(out - ref)))
    assert err < 2e-3, f"IFCA forward mismatch vs reference: max abs err = {err}"
    print("KERNEL_OK")
</pallas_src>

<mosaic_0001>
module attributes {stable_mosaic.version = 11 : i64} {
  func.func @kernel(%arg0: i32, %arg1: memref<128x128xf32, #tpu.memory_space<vmem>>, %arg2: memref<1x128xf32, #tpu.memory_space<vmem>>, %arg3: memref<1x128xf32, #tpu.memory_space<vmem>>, %arg4: memref<128x128xf32, #tpu.memory_space<vmem>>, %arg5: memref<128x128xf32, #tpu.memory_space<vmem>>) attributes {dimension_semantics = [#tpu.dimension_semantics<parallel>], iteration_bounds = array<i64: 1>, scalar_prefetch = 0 : i64, scratch_operands = 0 : i64, tpu.core_type = #tpu.core_type<tc>, window_params = [{transform_indices = @transform_0, window_bounds = array<i64: 128, 128>}, {pipeline_mode = #tpu.pipeline_mode<synchronous>, transform_indices = @transform_1, window_bounds = array<i64: 1, 128>}, {pipeline_mode = #tpu.pipeline_mode<synchronous>, transform_indices = @transform_2, window_bounds = array<i64: 1, 128>}, {pipeline_mode = #tpu.pipeline_mode<synchronous>, transform_indices = @transform_3, window_bounds = array<i64: 128, 128>}, {transform_indices = @transform_4, window_bounds = array<i64: 128, 128>}]} {
    %c0 = arith.constant 0 : index
    %c0_0 = arith.constant 0 : index
    %0 = vector.load %arg1[%c0, %c0_0] : memref<128x128xf32, #tpu.memory_space<vmem>>, vector<128x128xf32>
    %1 = tpu.iota {dimensions = array<i32: 0>} : vector<128x128xi32>
    %2 = arith.sitofp %1 : vector<128x128xi32> to vector<128x128xf32>
    %3 = tpu.iota {dimensions = array<i32: 1>} : vector<128x128xi32>
    %4 = arith.sitofp %3 : vector<128x128xi32> to vector<128x128xf32>
    %cst = arith.constant 5.000000e-01 : f32
    %5 = vector.broadcast %cst : f32 to vector<128x128xf32>
    %6 = arith.addf %2, %5 : vector<128x128xf32>
    %cst_1 = arith.constant 3.125000e-02 : f32
    %7 = vector.broadcast %cst_1 : f32 to vector<128x128xf32>
    %8 = arith.mulf %6, %7 : vector<128x128xf32>
    %9 = math.floor %8 : vector<128x128xf32>
    %cst_2 = arith.constant 5.000000e-01 : f32
    %10 = vector.broadcast %cst_2 : f32 to vector<128x128xf32>
    %11 = arith.addf %4, %10 : vector<128x128xf32>
    %cst_3 = arith.constant 3.125000e-02 : f32
    %12 = vector.broadcast %cst_3 : f32 to vector<128x128xf32>
    %13 = arith.mulf %11, %12 : vector<128x128xf32>
    %14 = math.floor %13 : vector<128x128xf32>
    %15 = arith.cmpf oeq, %9, %14 : vector<128x128xf32>
    %16 = arith.extui %15 : vector<128x128xi1> to vector<128x128xi32>
    %17 = arith.sitofp %16 : vector<128x128xi32> to vector<128x128xf32>
    %cst_4 = arith.constant dense<0.000000e+00> : vector<128x128xf32>
    %18 = tpu.matmul %0, %17, %cst_4 {dimension_numbers = #tpu.dot_dimension_numbers<[1], [0], [0], [1], [0, 0, 1, 1], [], []>} : vector<128x128xf32>, vector<128x128xf32>, vector<128x128xf32> -> vector<128x128xf32>
    %cst_5 = arith.constant 3.125000e-02 : f32
    %19 = vector.broadcast %cst_5 : f32 to vector<128x128xf32>
    %20 = arith.mulf %18, %19 : vector<128x128xf32>
    %21 = arith.subf %0, %20 : vector<128x128xf32>
    %22 = arith.mulf %21, %21 : vector<128x128xf32>
    %cst_6 = arith.constant dense<0.000000e+00> : vector<128x128xf32>
    %23 = tpu.matmul %22, %17, %cst_6 {dimension_numbers = #tpu.dot_dimension_numbers<[1], [0], [0], [1], [0, 0, 1, 1], [], []>} : vector<128x128xf32>, vector<128x128xf32>, vector<128x128xf32> -> vector<128x128xf32>
    %cst_7 = arith.constant 3.125000e-02 : f32
    %24 = vector.broadcast %cst_7 : f32 to vector<128x128xf32>
    %25 = arith.mulf %23, %24 : vector<128x128xf32>
    %cst_8 = arith.constant 9.99999974E-6 : f32
    %26 = vector.broadcast %cst_8 : f32 to vector<128x128xf32>
    %27 = arith.addf %25, %26 : vector<128x128xf32>
    %28 = math.rsqrt %27 : vector<128x128xf32>
    %29 = arith.mulf %21, %28 : vector<128x128xf32>
    %c0_9 = arith.constant 0 : index
    %c0_10 = arith.constant 0 : index
    %30 = vector.load %arg2[%c0_9, %c0_10] : memref<1x128xf32, #tpu.memory_space<vmem>>, vector<1x128xf32>
    %31 = vector.broadcast %30 : vector<1x128xf32> to vector<128x128xf32>
    %32 = arith.mulf %29, %31 : vector<128x128xf32>
    %c0_11 = arith.constant 0 : index
    %c0_12 = arith.constant 0 : index
    %33 = vector.load %arg3[%c0_11, %c0_12] : memref<1x128xf32, #tpu.memory_space<vmem>>, vector<1x128xf32>
    %34 = vector.broadcast %33 : vector<1x128xf32> to vector<128x128xf32>
    %35 = arith.addf %32, %34 : vector<128x128xf32>
    %c0_13 = arith.constant 0 : index
    %c0_14 = arith.constant 0 : index
    %36 = vector.load %arg4[%c0_13, %c0_14] : memref<128x128xf32, #tpu.memory_space<vmem>>, vector<128x128xf32>
    %cst_15 = arith.constant dense<0.000000e+00> : vector<128x128xf32>
    %37 = tpu.matmul %35, %36, %cst_15 {dimension_numbers = #tpu.dot_dimension_numbers<[1], [0], [0], [1], [0, 0, 1, 1], [], []>} : vector<128x128xf32>, vector<128x128xf32>, vector<128x128xf32> -> vector<128x128xf32>
    %c0_16 = arith.constant 0 : index
    %c0_17 = arith.constant 0 : index
    %38 = vector.load %arg5[%c0_16, %c0_17] : memref<128x128xf32, #tpu.memory_space<vmem>>, vector<128x128xf32>
    tpu.vector_store %arg5[%c0_16, %c0_17], %37 {strides = array<i32>} : memref<128x128xf32, #tpu.memory_space<vmem>>, vector<128x128xf32>,
    return
  }
  func.func @transform_0(%arg0: i32) -> (i32, i32) {
    %c0_i32 = arith.constant 0 : i32
    %c0_i32_0 = arith.constant 0 : i32
    return %arg0, %c0_i32 : i32, i32
  }
  func.func @transform_1(%arg0: i32) -> (i32, i32) {
    %c0_i32 = arith.constant 0 : i32
    %c0_i32_0 = arith.constant 0 : i32
    %c0_i32_1 = arith.constant 0 : i32
    return %c0_i32, %c0_i32_0 : i32, i32
  }
  func.func @transform_2(%arg0: i32) -> (i32, i32) {
    %c0_i32 = arith.constant 0 : i32
    %c0_i32_0 = arith.constant 0 : i32
    %c0_i32_1 = arith.constant 0 : i32
    return %c0_i32, %c0_i32_0 : i32, i32
  }
  func.func @transform_3(%arg0: i32) -> (i32, i32) {
    %c0_i32 = arith.constant 0 : i32
    %c0_i32_0 = arith.constant 0 : i32
    %c0_i32_1 = arith.constant 0 : i32
    return %c0_i32, %c0_i32_0 : i32, i32
  }
  func.func @transform_4(%arg0: i32) -> (i32, i32) {
    %c0_i32 = arith.constant 0 : i32
    %c0_i32_0 = arith.constant 0 : i32
    return %arg0, %c0_i32 : i32, i32
  }
}

</mosaic_0001>

<llo_original>
// kernel: tpu_custom_call.1
$region0: #{tpu_custom_call.1}
  #allocation0 [shape = 'u32[]', space=smem, size = 0x4, offset = 0x4, fixed_abs, tag = 'smem constant byte address 0x4 - core index']
  #allocation1 [shape = 'u32[144,128]{1,0:T(1,128)}', space=vmem, size = 0x12000, scoped, tag = 'internal scratch']
  %s0 = inlined_call_operand.hbm [shape: f32[128,128], index: 0, kind: input, shape index: {}]
  %s1 = inlined_call_operand.vmem [shape: f32[1,128], index: 1, kind: input, shape index: {}]
  %s2 = inlined_call_operand.vmem [shape: f32[1,128], index: 2, kind: input, shape index: {}]
  %s3 = inlined_call_operand.hbm [shape: f32[128,128], index: 3, kind: input, shape index: {}]
  %s4 = inlined_call_operand.hbm [shape: f32[128,128], index: 4, kind: output, shape index: {}]
  %s5 = sld [smem:[#allocation0]]
  $region34: #{tpu_custom_call.1} parent=0
    _
  %s7 = ssub.s32 1, %s5
  %s8 = scalar_select 0, %s7, %s5
  $region1: #{tpu_custom_call.1} parent=0
    #allocation2 [shape = 'u8[65536]{0}', space=vmem, size = 0x10000, scoped, tag = 'input window, operand 0, single buffered']
    #allocation3 [shape = 's32[1]{0}', space=sflag, size = 0x4, scoped, tag = 'scoped memory for tpu_custom_call.1']
    #allocation4 [shape = 's32[1]{0}', space=sflag, size = 0x4, scoped, tag = 'scoped memory for tpu_custom_call.1']
    #allocation5 [shape = 'u8[65536]{0}', space=vmem, size = 0x10000, scoped, tag = 'input window, operand 3, single buffered']
    #allocation6 [shape = 's32[1]{0}', space=sflag, size = 0x4, scoped, tag = 'scoped memory for tpu_custom_call.1']
    #allocation7 [shape = 'u8[65536]{0}', space=vmem, size = 0x10000, scoped, tag = 'output window, operand 0, single buffered']
    %9 = vsyncpa [#allocation3], 0
    %10 = vsyncpa [#allocation6], 0
    %11 = vsyncpa [#allocation4], 0
    // Predicated region
    $region2: #{tpu_custom_call.1} parent=1 // pred_check
      _
    $region3: #{tpu_custom_call.1} parent=1 // pred_check_branch
      %13 = sbr.rel (0) target = $region5
    $region4: #{tpu_custom_call.1} parent=1 // pred_region
      %s15 = ssub.s32 2048, 2048
      %16 = vsyncadd [#allocation3], %s15
      %s17 = sshll.u32 [#allocation2], 4
      %s18 = int_to_ptr.vmem [resolvable:$true] %s17
      %23 = dma.hbm_to_vmem [thread:$0]  %s0, 2048, %s18, [#allocation3], 128, 128, 8
    $region5: #{tpu_custom_call.1} parent=1 // pred_fallthru
      _
    // Predicated region
    $region6: #{tpu_custom_call.1} parent=1 // pred_check
      _
    $region7: #{tpu_custom_call.1} parent=1 // pred_check_branch
      %25 = sbr.rel (0) target = $region9
    $region8: #{tpu_custom_call.1} parent=1 // pred_region
      _
    $region9: #{tpu_custom_call.1} parent=1 // pred_fallthru
      _
    // Predicated region
    $region10: #{tpu_custom_call.1} parent=1 // pred_check
      _
    $region11: #{tpu_custom_call.1} parent=1 // pred_check_branch
      %27 = sbr.rel (0) target = $region13
    $region12: #{tpu_custom_call.1} parent=1 // pred_region
      _
    $region13: #{tpu_custom_call.1} parent=1 // pred_fallthru
      _
    // Predicated region
    $region14: #{tpu_custom_call.1} parent=1 // pred_check
      _
    $region15: #{tpu_custom_call.1} parent=1 // pred_check_branch
      %29 = sbr.rel (0) target = $region17
    $region16: #{tpu_custom_call.1} parent=1 // pred_region
      %s31 = ssub.s32 2048, 2048
      %32 = vsyncadd [#allocation6], %s31
      %s33 = sshll.u32 [#allocation5], 4
      %s34 = int_to_ptr.vmem [resolvable:$true] %s33
      %39 = dma.hbm_to_vmem [thread:$0]  %s3, 2048, %s34, [#allocation6], 128, 128, 8
    $region17: #{tpu_custom_call.1} parent=1 // pred_fallthru
      _
    // Predicated region
    $region18: #{tpu_custom_call.1} parent=1 // pred_check
      _
    $region19: #{tpu_custom_call.1} parent=1 // pred_check_branch
      %41 = sbr.rel (0) target = $region21
    $region20: #{tpu_custom_call.1} parent=1 // pred_region
      %42 = dma.done [#allocation3], 2048
    $region21: #{tpu_custom_call.1} parent=1 // pred_fallthru
      _
    // Predicated region
    $region22: #{tpu_custom_call.1} parent=1 // pred_check
      _
    $region23: #{tpu_custom_call.1} parent=1 // pred_check_branch
      %44 = sbr.rel (0) target = $region25
    $region24: #{tpu_custom_call.1} parent=1 // pred_region
      %45 = dma.done [#allocation6], 2048
    $region25: #{tpu_custom_call.1} parent=1 // pred_fallthru
      _
    %v46 = vld [vmem:[#allocation2] sm:$0xff]
    %v47 = vld [vmem:[#allocation2 + $0x8] sm:$0xff]
    %v48 = vld [vmem:[#allocation2 + $0x10] sm:$0xff]
    %v49 = vld [vmem:[#allocation2 + $0x18] sm:$0xff]
    %v50 = vld [vmem:[#allocation2 + $0x20] sm:$0xff]
    %v51 = vld [vmem:[#allocation2 + $0x28] sm:$0xff]
    %v52 = vld [vmem:[#allocation2 + $0x30] sm:$0xff]
    %v53 = vld [vmem:[#allocation2 + $0x38] sm:$0xff]
    %v54 = vld [vmem:[#allocation2 + $0x40] sm:$0xff]
    %v55 = vld [vmem:[#allocation2 + $0x48] sm:$0xff]
    %v56 = vld [vmem:[#allocation2 + $0x50] sm:$0xff]
    %v57 = vld [vmem:[#allocation2 + $0x58] sm:$0xff]
    %v58 = vld [vmem:[#allocation2 + $0x60] sm:$0xff]
    %v59 = vld [vmem:[#allocation2 + $0x68] sm:$0xff]
    %v60 = vld [vmem:[#allocation2 + $0x70] sm:$0xff]
    %v61 = vld [vmem:[#allocation2 + $0x78] sm:$0xff]
    %v62 = vlaneseq
    %v63 = vshrl.u32 %v62, 7
    %v64 = vadd.s32 %v63, 8
    %v65 = vadd.s32 %v63, 16
    %v66 = vadd.s32 %v63, 24
    %v67 = vadd.s32 %v63, 32
    %v68 = vadd.s32 %v63, 40
    %v69 = vadd.s32 %v63, 48
    %v70 = vadd.s32 %v63, 56
    %v71 = vadd.s32 %v63, 64
    %v72 = vadd.s32 %v63, 72
    %v73 = vadd.s32 %v63, 80
    %v74 = vadd.s32 %v63, 88
    %v75 = vadd.s32 %v63, 96
    %v76 = vadd.s32 %v63, 104
    %v77 = vadd.s32 %v63, 112
    %v78 = vadd.s32 %v63, 120
    %v79 = vcvt.s32.f32 %v63
    %v80 = vcvt.s32.f32 %v64
    %v81 = vcvt.s32.f32 %v65
    %v82 = vcvt.s32.f32 %v66
    %v83 = vcvt.s32.f32 %v67
    %v84 = vcvt.s32.f32 %v68
    %v85 = vcvt.s32.f32 %v69
    %v86 = vcvt.s32.f32 %v70
    %v87 = vcvt.s32.f32 %v71
    %v88 = vcvt.s32.f32 %v72
    %v89 = vcvt.s32.f32 %v73
    %v90 = vcvt.s32.f32 %v74
    %v91 = vcvt.s32.f32 %v75
    %v92 = vcvt.s32.f32 %v76
    %v93 = vcvt.s32.f32 %v77
    %v94 = vcvt.s32.f32 %v78
    %v95 = vlaneseq
    %v96 = vand.u32 %v95, 127
    %v97 = vcvt.s32.f32 %v96
    %v98 = vadd.f32 %v79, 0.5
    %v99 = vadd.f32 %v80, 0.5
    %v100 = vadd.f32 %v81, 0.5
    %v101 = vadd.f32 %v82, 0.5
    %v102 = vadd.f32 %v83, 0.5
    %v103 = vadd.f32 %v84, 0.5
    %v104 = vadd.f32 %v85, 0.5
    %v105 = vadd.f32 %v86, 0.5
    %v106 = vadd.f32 %v87, 0.5
    %v107 = vadd.f32 %v88, 0.5
    %v108 = vadd.f32 %v89, 0.5
    %v109 = vadd.f32 %v90, 0.5
    %v110 = vadd.f32 %v91, 0.5
    %v111 = vadd.f32 %v92, 0.5
    %v112 = vadd.f32 %v93, 0.5
    %v113 = vadd.f32 %v94, 0.5
    %v114 = vmul.f32 %v98, 0.03125
    %v115 = vmul.f32 %v99, 0.03125
    %v116 = vmul.f32 %v100, 0.03125
    %v117 = vmul.f32 %v101, 0.03125
    %v118 = vmul.f32 %v102, 0.03125
    %v119 = vmul.f32 %v103, 0.03125
    %v120 = vmul.f32 %v104, 0.03125
    %v121 = vmul.f32 %v105, 0.03125
    %v122 = vmul.f32 %v106, 0.03125
    %v123 = vmul.f32 %v107, 0.03125
    %v124 = vmul.f32 %v108, 0.03125
    %v125 = vmul.f32 %v109, 0.03125
    %v126 = vmul.f32 %v110, 0.03125
    %v127 = vmul.f32 %v111, 0.03125
    %v128 = vmul.f32 %v112, 0.03125
    %v129 = vmul.f32 %v113, 0.03125
    %v130 = vfloor.f32 %v114
    %v131 = vfloor.f32 %v115
    %v132 = vfloor.f32 %v116
    %v133 = vfloor.f32 %v117
    %v134 = vfloor.f32 %v118
    %v135 = vfloor.f32 %v119
    %v136 = vfloor.f32 %v120
    %v137 = vfloor.f32 %v121
    %v138 = vfloor.f32 %v122
    %v139 = vfloor.f32 %v123
    %v140 = vfloor.f32 %v124
    %v141 = vfloor.f32 %v125
    %v142 = vfloor.f32 %v126
    %v143 = vfloor.f32 %v127
    %v144 = vfloor.f32 %v128
    %v145 = vfloor.f32 %v129
    %v146 = vadd.f32 %v97, 0.5
    %v147 = vmul.f32 %v146, 0.03125
    %v148 = vfloor.f32 %v147
    %vm149 = vcmp.eq.f32.partialorder %v130, %v148
    %vm150 = vcmp.eq.f32.partialorder %v131, %v148
    %vm151 = vcmp.eq.f32.partialorder %v132, %v148
    %vm152 = vcmp.eq.f32.partialorder %v133, %v148
    %vm153 = vcmp.eq.f32.partialorder %v134, %v148
    %vm154 = vcmp.eq.f32.partialorder %v135, %v148
    %vm155 = vcmp.eq.f32.partialorder %v136, %v148
    %vm156 = vcmp.eq.f32.partialorder %v137, %v148
    %vm157 = vcmp.eq.f32.partialorder %v138, %v148
    %vm158 = vcmp.eq.f32.partialorder %v139, %v148
    %vm159 = vcmp.eq.f32.partialorder %v140, %v148
    %vm160 = vcmp.eq.f32.partialorder %v141, %v148
    %vm161 = vcmp.eq.f32.partialorder %v142, %v148
    %vm162 = vcmp.eq.f32.partialorder %v143, %v148
    %vm163 = vcmp.eq.f32.partialorder %v144, %v148
    %vm164 = vcmp.eq.f32.partialorder %v145, %v148
    %v165 = vsel %vm149, 1, 0
    %v166 = vsel %vm150, 1, 0
    %v167 = vsel %vm151, 1, 0
    %v168 = vsel %vm152, 1, 0
    %v169 = vsel %vm153, 1, 0
    %v170 = vsel %vm154, 1, 0
    %v171 = vsel %vm155, 1, 0
    %v172 = vsel %vm156, 1, 0
    %v173 = vsel %vm157, 1, 0
    %v174 = vsel %vm158, 1, 0
    %v175 = vsel %vm159, 1, 0
    %v176 = vsel %vm160, 1, 0
    %v177 = vsel %vm161, 1, 0
    %v178 = vsel %vm162, 1, 0
    %v179 = vsel %vm163, 1, 0
    %v180 = vsel %vm164, 1, 0
    %v181 = vcvt.s32.f32 %v165
    %v182 = vcvt.s32.f32 %v166
    %v183 = vcvt.s32.f32 %v167
    %v184 = vcvt.s32.f32 %v168
    %v185 = vcvt.s32.f32 %v169
    %v186 = vcvt.s32.f32 %v170
    %v187 = vcvt.s32.f32 %v171
    %v188 = vcvt.s32.f32 %v172
    %v189 = vcvt.s32.f32 %v173
    %v190 = vcvt.s32.f32 %v174
    %v191 = vcvt.s32.f32 %v175
    %v192 = vcvt.s32.f32 %v176
    %v193 = vcvt.s32.f32 %v177
    %v194 = vcvt.s32.f32 %v178
    %v195 = vcvt.s32.f32 %v179
    %v196 = vcvt.s32.f32 %v180
    %197 = vmatprep.subr.mxu0 0.0
    %198 = vmatpush1.msra.mxu0 %v196
    %199 = vmatprep.subr.mxu0 0.0
    %200 = vmatpush1.msra.mxu0 %v195
    %201 = vmatprep.subr.mxu0 0.0
    %202 = vmatpush1.msra.mxu0 %v194
    %203 = vmatprep.subr.mxu0 0.0
    %204 = vmatpush1.msra.mxu0 %v193
    %205 = vmatprep.subr.mxu0 0.0
    %206 = vmatpush1.msra.mxu0 %v192
    %207 = vmatprep.subr.mxu0 0.0
    %208 = vmatpush1.msra.mxu0 %v191
    %209 = vmatprep.subr.mxu0 0.0
    %210 = vmatpush1.msra.mxu0 %v190
    %211 = vmatprep.subr.mxu0 0.0
    %212 = vmatpush1.msra.mxu0 %v189
    %213 = vmatprep.subr.mxu0 0.0
    %214 = vmatpush1.msra.mxu0 %v188
    %215 = vmatprep.subr.mxu0 0.0
    %216 = vmatpush1.msra.mxu0 %v187
    %217 = vmatprep.subr.mxu0 0.0
    %218 = vmatpush1.msra.mxu0 %v186
    %219 = vmatprep.subr.mxu0 0.0
    %220 = vmatpush1.msra.mxu0 %v185
    %221 = vmatprep.subr.mxu0 0.0
    %222 = vmatpush1.msra.mxu0 %v184
    %223 = vmatprep.subr.mxu0 0.0
    %224 = vmatpush1.msra.mxu0 %v183
    %225 = vmatprep.subr.mxu0 0.0
    %226 = vmatpush1.msra.mxu0 %v182
    %227 = vmatprep.subr.mxu0 0.0
    %228 = vmatpush1.msra.mxu0 %v181
    %229 = vmatprep.subr.mxu0 0.0
    %230 = vmatpush2.msra.mxu0 0.0
    %231 = vmatprep.subr.mxu0 0.0
    %232 = vmatpush2.msra.mxu0 0.0
    %233 = vmatprep.subr.mxu0 0.0
    %234 = vmatpush2.msra.mxu0 0.0
    %235 = vmatprep.subr.mxu0 0.0
    %236 = vmatpush2.msra.mxu0 0.0
    %237 = vmatprep.subr.mxu0 0.0
    %238 = vmatpush2.msra.mxu0 0.0
    %239 = vmatprep.subr.mxu0 0.0
    %240 = vmatpush2.msra.mxu0 0.0
    %241 = vmatprep.subr.mxu0 0.0
    %242 = vmatpush2.msra.mxu0 0.0
    %243 = vmatprep.subr.mxu0 0.0
    %244 = vmatpush2.msra.mxu0 0.0
    %245 = vmatprep.subr.mxu0 0.0
    %246 = vmatpush2.msra.mxu0 0.0
    %247 = vmatprep.subr.mxu0 0.0
    %248 = vmatpush2.msra.mxu0 0.0
    %249 = vmatprep.subr.mxu0 0.0
    %250 = vmatpush2.msra.mxu0 0.0
    %251 = vmatprep.subr.mxu0 0.0
    %252 = vmatpush2.msra.mxu0 0.0
    %253 = vmatprep.subr.mxu0 0.0
    %254 = vmatpush2.msra.mxu0 0.0
    %255 = vmatprep.subr.mxu0 0.0
    %256 = vmatpush2.msra.mxu0 0.0
    %257 = vmatprep.subr.mxu0 0.0
    %258 = vmatpush2.msra.mxu0 0.0
    %259 = vmatprep.subr.mxu0 0.0
    %260 = vmatpush2.msra.mxu0 0.0
    %261 = vmatprep.mubr.f32.mxu0 0.0
    %262 = vmatmul.mubr.f32.gmra.mxu0 %v46
    %v263 = vpop.f32.mrf.mxu0
    %v264 = vadd.f32 0.0, %v263
    %v265 = vpop.f32.mrf.mxu0
    %266 = vmatprep.mubr.f32.mxu0 0.0
    %267 = vmatmul.mubr.f32.gmra.mxu0 %v47
    %v268 = vpop.f32.mrf.mxu0
    %v269 = vadd.f32 0.0, %v268
    %v270 = vpop.f32.mrf.mxu0
    %271 = vmatprep.mubr.f32.mxu0 0.0
    %272 = vmatmul.mubr.f32.gmra.mxu0 %v48
    %v273 = vpop.f32.mrf.mxu0
    %v274 = vadd.f32 0.0, %v273
    %v275 = vpop.f32.mrf.mxu0
    %276 = vmatprep.mubr.f32.mxu0 0.0
    %277 = vmatmul.mubr.f32.gmra.mxu0 %v49
    %v278 = vpop.f32.mrf.mxu0
    %v279 = vadd.f32 0.0, %v278
    %v280 = vpop.f32.mrf.mxu0
    %281 = vmatprep.mubr.f32.mxu0 0.0
    %282 = vmatmul.mubr.f32.gmra.mxu0 %v50
    %v283 = vpop.f32.mrf.mxu0
    %v284 = vadd.f32 0.0, %v283
    %v285 = vpop.f32.mrf.mxu0
    %286 = vmatprep.mubr.f32.mxu0 0.0
    %287 = vmatmul.mubr.f32.gmra.mxu0 %v51
    %v288 = vpop.f32.mrf.mxu0
    %v289 = vadd.f32 0.0, %v288
    %v290 = vpop.f32.mrf.mxu0
    %291 = vmatprep.mubr.f32.mxu0 0.0
    %292 = vmatmul.mubr.f32.gmra.mxu0 %v52
    %v293 = vpop.f32.mrf.mxu0
    %v294 = vadd.f32 0.0, %v293
    %v295 = vpop.f32.mrf.mxu0
    %296 = vmatprep.mubr.f32.mxu0 0.0
    %297 = vmatmul.mubr.f32.gmra.mxu0 %v53
    %v298 = vpop.f32.mrf.mxu0
    %v299 = vadd.f32 0.0, %v298
    %v300 = vpop.f32.mrf.mxu0
    %301 = vmatprep.mubr.f32.mxu0 0.0
    %302 = vmatmul.mubr.f32.gmra.mxu0 %v54
    %v303 = vpop.f32.mrf.mxu0
    %v304 = vadd.f32 0.0, %v303
    %v305 = vpop.f32.mrf.mxu0
    %306 = vmatprep.mubr.f32.mxu0 0.0
    %307 = vmatmul.mubr.f32.gmra.mxu0 %v55
    %v308 = vpop.f32.mrf.mxu0
    %v309 = vadd.f32 0.0, %v308
    %v310 = vpop.f32.mrf.mxu0
    %311 = vmatprep.mubr.f32.mxu0 0.0
    %312 = vmatmul.mubr.f32.gmra.mxu0 %v56
    %v313 = vpop.f32.mrf.mxu0
    %v314 = vadd.f32 0.0, %v313
    %v315 = vpop.f32.mrf.mxu0
    %316 = vmatprep.mubr.f32.mxu0 0.0
    %317 = vmatmul.mubr.f32.gmra.mxu0 %v57
    %v318 = vpop.f32.mrf.mxu0
    %v319 = vadd.f32 0.0, %v318
    %v320 = vpop.f32.mrf.mxu0
    %321 = vmatprep.mubr.f32.mxu0 0.0
    %322 = vmatmul.mubr.f32.gmra.mxu0 %v58
    %v323 = vpop.f32.mrf.mxu0
    %v324 = vadd.f32 0.0, %v323
    %v325 = vpop.f32.mrf.mxu0
    %326 = vmatprep.mubr.f32.mxu0 0.0
    %327 = vmatmul.mubr.f32.gmra.mxu0 %v59
    %v328 = vpop.f32.mrf.mxu0
    %v329 = vadd.f32 0.0, %v328
    %v330 = vpop.f32.mrf.mxu0
    %331 = vmatprep.mubr.f32.mxu0 0.0
    %332 = vmatmul.mubr.f32.gmra.mxu0 %v60
    %v333 = vpop.f32.mrf.mxu0
    %v334 = vadd.f32 0.0, %v333
    %v335 = vpop.f32.mrf.mxu0
    %336 = vmatprep.mubr.f32.mxu0 0.0
    %337 = vmatmul.mubr.f32.gmra.mxu0 %v61
    %v338 = vpop.f32.mrf.mxu0
    %v339 = vadd.f32 0.0, %v338
    %v340 = vpop.f32.mrf.mxu0
    %341 = vdwg.mxu0
    %v342 = vmul.f32 %v264, 0.03125
    %v343 = vmul.f32 %v269, 0.03125
    %v344 = vmul.f32 %v274, 0.03125
    %v345 = vmul.f32 %v279, 0.03125
    %v346 = vmul.f32 %v284, 0.03125
    %v347 = vmul.f32 %v289, 0.03125
    %v348 = vmul.f32 %v294, 0.03125
    %v349 = vmul.f32 %v299, 0.03125
    %v350 = vmul.f32 %v304, 0.03125
    %v351 = vmul.f32 %v309, 0.03125
    %v352 = vmul.f32 %v314, 0.03125
    %v353 = vmul.f32 %v319, 0.03125
    %v354 = vmul.f32 %v324, 0.03125
    %v355 = vmul.f32 %v329, 0.03125
    %v356 = vmul.f32 %v334, 0.03125
    %v357 = vmul.f32 %v339, 0.03125
    %v358 = vsub.f32 %v46, %v342
    %v359 = vsub.f32 %v47, %v343
    %v360 = vsub.f32 %v48, %v344
    %v361 = vsub.f32 %v49, %v345
    %v362 = vsub.f32 %v50, %v346
    %v363 = vsub.f32 %v51, %v347
    %v364 = vsub.f32 %v52, %v348
    %v365 = vsub.f32 %v53, %v349
    %v366 = vsub.f32 %v54, %v350
    %v367 = vsub.f32 %v55, %v351
    %v368 = vsub.f32 %v56, %v352
    %v369 = vsub.f32 %v57, %v353
    %v370 = vsub.f32 %v58, %v354
    %v371 = vsub.f32 %v59, %v355
    %v372 = vsub.f32 %v60, %v356
    %v373 = vsub.f32 %v61, %v357
    %v374 = vmul.f32 %v358, %v358
    %v375 = vmul.f32 %v359, %v359
    %v376 = vmul.f32 %v360, %v360
    %v377 = vmul.f32 %v361, %v361
    %v378 = vmul.f32 %v362, %v362
    %v379 = vmul.f32 %v363, %v363
    %v380 = vmul.f32 %v364, %v364
    %v381 = vmul.f32 %v365, %v365
    %v382 = vmul.f32 %v366, %v366
    %v383 = vmul.f32 %v367, %v367
    %v384 = vmul.f32 %v368, %v368
    %v385 = vmul.f32 %v369, %v369
    %v386 = vmul.f32 %v370, %v370
    %v387 = vmul.f32 %v371, %v371
    %v388 = vmul.f32 %v372, %v372
    %v389 = vmul.f32 %v373, %v373
    %390 = vmatprep.subr.mxu0 0.0
    %391 = vmatpush1.msra.mxu0 %v196
    %392 = vmatprep.subr.mxu0 0.0
    %393 = vmatpush1.msra.mxu0 %v195
    %394 = vmatprep.subr.mxu0 0.0
    %395 = vmatpush1.msra.mxu0 %v194
    %396 = vmatprep.subr.mxu0 0.0
    %397 = vmatpush1.msra.mxu0 %v193
    %398 = vmatprep.subr.mxu0 0.0
    %399 = vmatpush1.msra.mxu0 %v192
    %400 = vmatprep.subr.mxu0 0.0
    %401 = vmatpush1.msra.mxu0 %v191
    %402 = vmatprep.subr.mxu0 0.0
    %403 = vmatpush1.msra.mxu0 %v190
    %404 = vmatprep.subr.mxu0 0.0
    %405 = vmatpush1.msra.mxu0 %v189
    %406 = vmatprep.subr.mxu0 0.0
    %407 = vmatpush1.msra.mxu0 %v188
    %408 = vmatprep.subr.mxu0 0.0
    %409 = vmatpush1.msra.mxu0 %v187
    %410 = vmatprep.subr.mxu0 0.0
    %411 = vmatpush1.msra.mxu0 %v186
    %412 = vmatprep.subr.mxu0 0.0
    %413 = vmatpush1.msra.mxu0 %v185
    %414 = vmatprep.subr.mxu0 0.0
    %415 = vmatpush1.msra.mxu0 %v184
    %416 = vmatprep.subr.mxu0 0.0
    %417 = vmatpush1.msra.mxu0 %v183
    %418 = vmatprep.subr.mxu0 0.0
    %419 = vmatpush1.msra.mxu0 %v182
    %420 = vmatprep.subr.mxu0 0.0
    %421 = vmatpush1.msra.mxu0 %v181
    %422 = vmatprep.subr.mxu0 0.0
    %423 = vmatpush2.msra.mxu0 0.0
    %424 = vmatprep.subr.mxu0 0.0
    %425 = vmatpush2.msra.mxu0 0.0
    %426 = vmatprep.subr.mxu0 0.0
    %427 = vmatpush2.msra.mxu0 0.0
    %428 = vmatprep.subr.mxu0 0.0
    %429 = vmatpush2.msra.mxu0 0.0
    %430 = vmatprep.subr.mxu0 0.0
    %431 = vmatpush2.msra.mxu0 0.0
    %432 = vmatprep.subr.mxu0 0.0
    %433 = vmatpush2.msra.mxu0 0.0
    %434 = vmatprep.subr.mxu0 0.0
    %435 = vmatpush2.msra.mxu0 0.0
    %436 = vmatprep.subr.mxu0 0.0
    %437 = vmatpush2.msra.mxu0 0.0
    %438 = vmatprep.subr.mxu0 0.0
    %439 = vmatpush2.msra.mxu0 0.0
    %440 = vmatprep.subr.mxu0 0.0
    %441 = vmatpush2.msra.mxu0 0.0
    %442 = vmatprep.subr.mxu0 0.0
    %443 = vmatpush2.msra.mxu0 0.0
    %444 = vmatprep.subr.mxu0 0.0
    %445 = vmatpush2.msra.mxu0 0.0
    %446 = vmatprep.subr.mxu0 0.0
    %447 = vmatpush2.msra.mxu0 0.0
    %448 = vmatprep.subr.mxu0 0.0
    %449 = vmatpush2.msra.mxu0 0.0
    %450 = vmatprep.subr.mxu0 0.0
    %451 = vmatpush2.msra.mxu0 0.0
    %452 = vmatprep.subr.mxu0 0.0
    %453 = vmatpush2.msra.mxu0 0.0
    %454 = vmatprep.mubr.f32.mxu0 0.0
    %455 = vmatmul.mubr.f32.gmra.mxu0 %v374
    %v456 = vpop.f32.mrf.mxu0
    %v457 = vadd.f32 0.0, %v456
    %v458 = vpop.f32.mrf.mxu0
    %459 = vmatprep.mubr.f32.mxu0 0.0
    %460 = vmatmul.mubr.f32.gmra.mxu0 %v375
    %v461 = vpop.f32.mrf.mxu0
    %v462 = vadd.f32 0.0, %v461
    %v463 = vpop.f32.mrf.mxu0
    %464 = vmatprep.mubr.f32.mxu0 0.0
    %465 = vmatmul.mubr.f32.gmra.mxu0 %v376
    %v466 = vpop.f32.mrf.mxu0
    %v467 = vadd.f32 0.0, %v466
    %v468 = vpop.f32.mrf.mxu0
    %469 = vmatprep.mubr.f32.mxu0 0.0
    %470 = vmatmul.mubr.f32.gmra.mxu0 %v377
    %v471 = vpop.f32.mrf.mxu0
    %v472 = vadd.f32 0.0, %v471
    %v473 = vpop.f32.mrf.mxu0
    %474 = vmatprep.mubr.f32.mxu0 0.0
    %475 = vmatmul.mubr.f32.gmra.mxu0 %v378
    %v476 = vpop.f32.mrf.mxu0
    %v477 = vadd.f32 0.0, %v476
    %v478 = vpop.f32.mrf.mxu0
    %479 = vmatprep.mubr.f32.mxu0 0.0
    %480 = vmatmul.mubr.f32.gmra.mxu0 %v379
    %v481 = vpop.f32.mrf.mxu0
    %v482 = vadd.f32 0.0, %v481
    %v483 = vpop.f32.mrf.mxu0
    %484 = vmatprep.mubr.f32.mxu0 0.0
    %485 = vmatmul.mubr.f32.gmra.mxu0 %v380
    %v486 = vpop.f32.mrf.mxu0
    %v487 = vadd.f32 0.0, %v486
    %v488 = vpop.f32.mrf.mxu0
    %489 = vmatprep.mubr.f32.mxu0 0.0
    %490 = vmatmul.mubr.f32.gmra.mxu0 %v381
    %v491 = vpop.f32.mrf.mxu0
    %v492 = vadd.f32 0.0, %v491
    %v493 = vpop.f32.mrf.mxu0
    %494 = vmatprep.mubr.f32.mxu0 0.0
    %495 = vmatmul.mubr.f32.gmra.mxu0 %v382
    %v496 = vpop.f32.mrf.mxu0
    %v497 = vadd.f32 0.0, %v496
    %v498 = vpop.f32.mrf.mxu0
    %499 = vmatprep.mubr.f32.mxu0 0.0
    %500 = vmatmul.mubr.f32.gmra.mxu0 %v383
    %v501 = vpop.f32.mrf.mxu0
    %v502 = vadd.f32 0.0, %v501
    %v503 = vpop.f32.mrf.mxu0
    %504 = vmatprep.mubr.f32.mxu0 0.0
    %505 = vmatmul.mubr.f32.gmra.mxu0 %v384
    %v506 = vpop.f32.mrf.mxu0
    %v507 = vadd.f32 0.0, %v506
    %v508 = vpop.f32.mrf.mxu0
    %509 = vmatprep.mubr.f32.mxu0 0.0
    %510 = vmatmul.mubr.f32.gmra.mxu0 %v385
    %v511 = vpop.f32.mrf.mxu0
    %v512 = vadd.f32 0.0, %v511
    %v513 = vpop.f32.mrf.mxu0
    %514 = vmatprep.mubr.f32.mxu0 0.0
    %515 = vmatmul.mubr.f32.gmra.mxu0 %v386
    %v516 = vpop.f32.mrf.mxu0
    %v517 = vadd.f32 0.0, %v516
    %v518 = vpop.f32.mrf.mxu0
    %519 = vmatprep.mubr.f32.mxu0 0.0
    %520 = vmatmul.mubr.f32.gmra.mxu0 %v387
    %v521 = vpop.f32.mrf.mxu0
    %v522 = vadd.f32 0.0, %v521
    %v523 = vpop.f32.mrf.mxu0
    %524 = vmatprep.mubr.f32.mxu0 0.0
    %525 = vmatmul.mubr.f32.gmra.mxu0 %v388
    %v526 = vpop.f32.mrf.mxu0
    %v527 = vadd.f32 0.0, %v526
    %v528 = vpop.f32.mrf.mxu0
    %529 = vmatprep.mubr.f32.mxu0 0.0
    %530 = vmatmul.mubr.f32.gmra.mxu0 %v389
    %v531 = vpop.f32.mrf.mxu0
    %v532 = vadd.f32 0.0, %v531
    %v533 = vpop.f32.mrf.mxu0
    %534 = vdwg.mxu0
    %v535 = vmul.f32 %v457, 0.03125
    %v536 = vmul.f32 %v462, 0.03125
    %v537 = vmul.f32 %v467, 0.03125
    %v538 = vmul.f32 %v472, 0.03125
    %v539 = vmul.f32 %v477, 0.03125
    %v540 = vmul.f32 %v482, 0.03125
    %v541 = vmul.f32 %v487, 0.03125
    %v542 = vmul.f32 %v492, 0.03125
    %v543 = vmul.f32 %v497, 0.03125
    %v544 = vmul.f32 %v502, 0.03125
    %v545 = vmul.f32 %v507, 0.03125
    %v546 = vmul.f32 %v512, 0.03125
    %v547 = vmul.f32 %v517, 0.03125
    %v548 = vmul.f32 %v522, 0.03125
    %v549 = vmul.f32 %v527, 0.03125
    %v550 = vmul.f32 %v532, 0.03125
    %v551 = vadd.f32 %v535, 1e-05
    %v552 = vadd.f32 %v536, 1e-05
    %v553 = vadd.f32 %v537, 1e-05
    %v554 = vadd.f32 %v538, 1e-05
    %v555 = vadd.f32 %v539, 1e-05
    %v556 = vadd.f32 %v540, 1e-05
    %v557 = vadd.f32 %v541, 1e-05
    %v558 = vadd.f32 %v542, 1e-05
    %v559 = vadd.f32 %v543, 1e-05
    %v560 = vadd.f32 %v544, 1e-05
    %v561 = vadd.f32 %v545, 1e-05
    %v562 = vadd.f32 %v546, 1e-05
    %v563 = vadd.f32 %v547, 1e-05
    %v564 = vadd.f32 %v548, 1e-05
    %v565 = vadd.f32 %v549, 1e-05
    %v566 = vadd.f32 %v550, 1e-05
    %v567 = vrsqrt.pop %v551
    %v568 = vrsqrt.pop %v552
    %v569 = vrsqrt.pop %v553
    %v570 = vrsqrt.pop %v554
    %v571 = vrsqrt.pop %v555
    %v572 = vrsqrt.pop %v556
    %v573 = vrsqrt.pop %v557
    %v574 = vrsqrt.pop %v558
    %v575 = vrsqrt.pop %v559
    %v576 = vrsqrt.pop %v560
    %v577 = vrsqrt.pop %v561
    %v578 = vrsqrt.pop %v562
    %v579 = vrsqrt.pop %v563
    %v580 = vrsqrt.pop %v564
    %v581 = vrsqrt.pop %v565
    %v582 = vrsqrt.pop %v566
    %v583 = vmul.f32 %v358, %v567
    %v584 = vmul.f32 %v359, %v568
    %v585 = vmul.f32 %v360, %v569
    %v586 = vmul.f32 %v361, %v570
    %v587 = vmul.f32 %v362, %v571
    %v588 = vmul.f32 %v363, %v572
    %v589 = vmul.f32 %v364, %v573
    %v590 = vmul.f32 %v365, %v574
    %v591 = vmul.f32 %v366, %v575
    %v592 = vmul.f32 %v367, %v576
    %v593 = vmul.f32 %v368, %v577
    %v594 = vmul.f32 %v369, %v578
    %v595 = vmul.f32 %v370, %v579
    %v596 = vmul.f32 %v371, %v580
    %v597 = vmul.f32 %v372, %v581
    %v598 = vmul.f32 %v373, %v582
    %v599 = vld [vmem:[%s1] sm:$0x1]
    %v601 = vlaneseq
    %v602 = vshrl.u32 %v601, 7
    %v603 = vsub.s32 0, %v602
    %v604 = vrot.slane %v599, %v603
    %v606 = vmul.f32 %v583, %v604
    %v607 = vmul.f32 %v584, %v604
    %v608 = vmul.f32 %v585, %v604
    %v609 = vmul.f32 %v586, %v604
    %v610 = vmul.f32 %v587, %v604
    %v611 = vmul.f32 %v588, %v604
    %v612 = vmul.f32 %v589, %v604
    %v613 = vmul.f32 %v590, %v604
    %v614 = vmul.f32 %v591, %v604
    %v615 = vmul.f32 %v592, %v604
    %v616 = vmul.f32 %v593, %v604
    %v617 = vmul.f32 %v594, %v604
    %v618 = vmul.f32 %v595, %v604
    %v619 = vmul.f32 %v596, %v604
    %v620 = vmul.f32 %v597, %v604
    %v621 = vmul.f32 %v598, %v604
    %v622 = vld [vmem:[%s2] sm:$0x1]
    %v624 = vlaneseq
    %v625 = vshrl.u32 %v624, 7
    %v626 = vsub.s32 0, %v625
    %v627 = vrot.slane %v622, %v626
    %v629 = vadd.f32 %v606, %v627
    %v630 = vadd.f32 %v607, %v627
    %v631 = vadd.f32 %v608, %v627
    %v632 = vadd.f32 %v609, %v627
    %v633 = vadd.f32 %v610, %v627
    %v634 = vadd.f32 %v611, %v627
    %v635 = vadd.f32 %v612, %v627
    %v636 = vadd.f32 %v613, %v627
    %v637 = vadd.f32 %v614, %v627
    %v638 = vadd.f32 %v615, %v627
    %v639 = vadd.f32 %v616, %v627
    %v640 = vadd.f32 %v617, %v627
    %v641 = vadd.f32 %v618, %v627
    %v642 = vadd.f32 %v619, %v627
    %v643 = vadd.f32 %v620, %v627
    %v644 = vadd.f32 %v621, %v627
    %v645 = vld [vmem:[#allocation5] sm:$0xff]
    %v646 = vld [vmem:[#allocation5 + $0x8] sm:$0xff]
    %v647 = vld [vmem:[#allocation5 + $0x10] sm:$0xff]
    %v648 = vld [vmem:[#allocation5 + $0x18] sm:$0xff]
    %v649 = vld [vmem:[#allocation5 + $0x20] sm:$0xff]
    %v650 = vld [vmem:[#allocation5 + $0x28] sm:$0xff]
    %v651 = vld [vmem:[#allocation5 + $0x30] sm:$0xff]
    %v652 = vld [vmem:[#allocation5 + $0x38] sm:$0xff]
    %v653 = vld [vmem:[#allocation5 + $0x40] sm:$0xff]
    %v654 = vld [vmem:[#allocation5 + $0x48] sm:$0xff]
    %v655 = vld [vmem:[#allocation5 + $0x50] sm:$0xff]
    %v656 = vld [vmem:[#allocation5 + $0x58] sm:$0xff]
    %v657 = vld [vmem:[#allocation5 + $0x60] sm:$0xff]
    %v658 = vld [vmem:[#allocation5 + $0x68] sm:$0xff]
    %v659 = vld [vmem:[#allocation5 + $0x70] sm:$0xff]
    %v660 = vld [vmem:[#allocation5 + $0x78] sm:$0xff]
    %661 = vmatprep.subr.mxu0 0.0
    %662 = vmatpush1.msra.mxu0 %v660
    %663 = vmatprep.subr.mxu0 0.0
    %664 = vmatpush1.msra.mxu0 %v659
    %665 = vmatprep.subr.mxu0 0.0
    %666 = vmatpush1.msra.mxu0 %v658
    %667 = vmatprep.subr.mxu0 0.0
    %668 = vmatpush1.msra.mxu0 %v657
    %669 = vmatprep.subr.mxu0 0.0
    %670 = vmatpush1.msra.mxu0 %v656
    %671 = vmatprep.subr.mxu0 0.0
    %672 = vmatpush1.msra.mxu0 %v655
    %673 = vmatprep.subr.mxu0 0.0
    %674 = vmatpush1.msra.mxu0 %v654
    %675 = vmatprep.subr.mxu0 0.0
    %676 = vmatpush1.msra.mxu0 %v653
    %677 = vmatprep.subr.mxu0 0.0
    %678 = vmatpush1.msra.mxu0 %v652
    %679 = vmatprep.subr.mxu0 0.0
    %680 = vmatpush1.msra.mxu0 %v651
    %681 = vmatprep.subr.mxu0 0.0
    %682 = vmatpush1.msra.mxu0 %v650
    %683 = vmatprep.subr.mxu0 0.0
    %684 = vmatpush1.msra.mxu0 %v649
    %685 = vmatprep.subr.mxu0 0.0
    %686 = vmatpush1.msra.mxu0 %v648
    %687 = vmatprep.subr.mxu0 0.0
    %688 = vmatpush1.msra.mxu0 %v647
    %689 = vmatprep.subr.mxu0 0.0
    %690 = vmatpush1.msra.mxu0 %v646
    %691 = vmatprep.subr.mxu0 0.0
    %692 = vmatpush1.msra.mxu0 %v645
    %693 = vmatprep.subr.mxu0 0.0
    %694 = vmatpush2.msra.mxu0 0.0
    %695 = vmatprep.subr.mxu0 0.0
    %696 = vmatpush2.msra.mxu0 0.0
    %697 = vmatprep.subr.mxu0 0.0
    %698 = vmatpush2.msra.mxu0 0.0
    %699 = vmatprep.subr.mxu0 0.0
    %700 = vmatpush2.msra.mxu0 0.0
    %701 = vmatprep.subr.mxu0 0.0
    %702 = vmatpush2.msra.mxu0 0.0
    %703 = vmatprep.subr.mxu0 0.0
    %704 = vmatpush2.msra.mxu0 0.0
    %705 = vmatprep.subr.mxu0 0.0
    %706 = vmatpush2.msra.mxu0 0.0
    %707 = vmatprep.subr.mxu0 0.0
    %708 = vmatpush2.msra.mxu0 0.0
    %709 = vmatprep.subr.mxu0 0.0
    %710 = vmatpush2.msra.mxu0 0.0
    %711 = vmatprep.subr.mxu0 0.0
    %712 = vmatpush2.msra.mxu0 0.0
    %713 = vmatprep.subr.mxu0 0.0
    %714 = vmatpush2.msra.mxu0 0.0
    %715 = vmatprep.subr.mxu0 0.0
    %716 = vmatpush2.msra.mxu0 0.0
    %717 = vmatprep.subr.mxu0 0.0
    %718 = vmatpush2.msra.mxu0 0.0
    %719 = vmatprep.subr.mxu0 0.0
    %720 = vmatpush2.msra.mxu0 0.0
    %721 = vmatprep.subr.mxu0 0.0
    %722 = vmatpush2.msra.mxu0 0.0
    %723 = vmatprep.subr.mxu0 0.0
    %724 = vmatpush2.msra.mxu0 0.0
    %725 = vmatprep.mubr.f32.mxu0 0.0
    %726 = vmatmul.mubr.f32.gmra.mxu0 %v629
    %v727 = vpop.f32.mrf.mxu0
    %v728 = vadd.f32 0.0, %v727
    %v729 = vpop.f32.mrf.mxu0
    %730 = vmatprep.mubr.f32.mxu0 0.0
    %731 = vmatmul.mubr.f32.gmra.mxu0 %v630
    %v732 = vpop.f32.mrf.mxu0
    %v733 = vadd.f32 0.0, %v732
    %v734 = vpop.f32.mrf.mxu0
    %735 = vmatprep.mubr.f32.mxu0 0.0
    %736 = vmatmul.mubr.f32.gmra.mxu0 %v631
    %v737 = vpop.f32.mrf.mxu0
    %v738 = vadd.f32 0.0, %v737
    %v739 = vpop.f32.mrf.mxu0
    %740 = vmatprep.mubr.f32.mxu0 0.0
    %741 = vmatmul.mubr.f32.gmra.mxu0 %v632
    %v742 = vpop.f32.mrf.mxu0
    %v743 = vadd.f32 0.0, %v742
    %v744 = vpop.f32.mrf.mxu0
    %745 = vmatprep.mubr.f32.mxu0 0.0
    %746 = vmatmul.mubr.f32.gmra.mxu0 %v633
    %v747 = vpop.f32.mrf.mxu0
    %v748 = vadd.f32 0.0, %v747
    %v749 = vpop.f32.mrf.mxu0
    %750 = vmatprep.mubr.f32.mxu0 0.0
    %751 = vmatmul.mubr.f32.gmra.mxu0 %v634
    %v752 = vpop.f32.mrf.mxu0
    %v753 = vadd.f32 0.0, %v752
    %v754 = vpop.f32.mrf.mxu0
    %755 = vmatprep.mubr.f32.mxu0 0.0
    %756 = vmatmul.mubr.f32.gmra.mxu0 %v635
    %v757 = vpop.f32.mrf.mxu0
    %v758 = vadd.f32 0.0, %v757
    %v759 = vpop.f32.mrf.mxu0
    %760 = vmatprep.mubr.f32.mxu0 0.0
    %761 = vmatmul.mubr.f32.gmra.mxu0 %v636
    %v762 = vpop.f32.mrf.mxu0
    %v763 = vadd.f32 0.0, %v762
    %v764 = vpop.f32.mrf.mxu0
    %765 = vmatprep.mubr.f32.mxu0 0.0
    %766 = vmatmul.mubr.f32.gmra.mxu0 %v637
    %v767 = vpop.f32.mrf.mxu0
    %v768 = vadd.f32 0.0, %v767
    %v769 = vpop.f32.mrf.mxu0
    %770 = vmatprep.mubr.f32.mxu0 0.0
    %771 = vmatmul.mubr.f32.gmra.mxu0 %v638
    %v772 = vpop.f32.mrf.mxu0
    %v773 = vadd.f32 0.0, %v772
    %v774 = vpop.f32.mrf.mxu0
    %775 = vmatprep.mubr.f32.mxu0 0.0
    %776 = vmatmul.mubr.f32.gmra.mxu0 %v639
    %v777 = vpop.f32.mrf.mxu0
    %v778 = vadd.f32 0.0, %v777
    %v779 = vpop.f32.mrf.mxu0
    %780 = vmatprep.mubr.f32.mxu0 0.0
    %781 = vmatmul.mubr.f32.gmra.mxu0 %v640
    %v782 = vpop.f32.mrf.mxu0
    %v783 = vadd.f32 0.0, %v782
    %v784 = vpop.f32.mrf.mxu0
    %785 = vmatprep.mubr.f32.mxu0 0.0
    %786 = vmatmul.mubr.f32.gmra.mxu0 %v641
    %v787 = vpop.f32.mrf.mxu0
    %v788 = vadd.f32 0.0, %v787
    %v789 = vpop.f32.mrf.mxu0
    %790 = vmatprep.mubr.f32.mxu0 0.0
    %791 = vmatmul.mubr.f32.gmra.mxu0 %v642
    %v792 = vpop.f32.mrf.mxu0
    %v793 = vadd.f32 0.0, %v792
    %v794 = vpop.f32.mrf.mxu0
    %795 = vmatprep.mubr.f32.mxu0 0.0
    %796 = vmatmul.mubr.f32.gmra.mxu0 %v643
    %v797 = vpop.f32.mrf.mxu0
    %v798 = vadd.f32 0.0, %v797
    %v799 = vpop.f32.mrf.mxu0
    %800 = vmatprep.mubr.f32.mxu0 0.0
    %801 = vmatmul.mubr.f32.gmra.mxu0 %v644
    %v802 = vpop.f32.mrf.mxu0
    %v803 = vadd.f32 0.0, %v802
    %v804 = vpop.f32.mrf.mxu0
    %805 = vdwg.mxu0
    %806 = vst [vmem:[#allocation7] sm:$0xff] %v728
    %807 = vst [vmem:[#allocation7 + $0x8] sm:$0xff] %v733
    %808 = vst [vmem:[#allocation7 + $0x10] sm:$0xff] %v738
    %809 = vst [vmem:[#allocation7 + $0x18] sm:$0xff] %v743
    %810 = vst [vmem:[#allocation7 + $0x20] sm:$0xff] %v748
    %811 = vst [vmem:[#allocation7 + $0x28] sm:$0xff] %v753
    %812 = vst [vmem:[#allocation7 + $0x30] sm:$0xff] %v758
    %813 = vst [vmem:[#allocation7 + $0x38] sm:$0xff] %v763
    %814 = vst [vmem:[#allocation7 + $0x40] sm:$0xff] %v768
    %815 = vst [vmem:[#allocation7 + $0x48] sm:$0xff] %v773
    %816 = vst [vmem:[#allocation7 + $0x50] sm:$0xff] %v778
    %817 = vst [vmem:[#allocation7 + $0x58] sm:$0xff] %v783
    %818 = vst [vmem:[#allocation7 + $0x60] sm:$0xff] %v788
    %819 = vst [vmem:[#allocation7 + $0x68] sm:$0xff] %v793
    %820 = vst [vmem:[#allocation7 + $0x70] sm:$0xff] %v798
    %821 = vst [vmem:[#allocation7 + $0x78] sm:$0xff] %v803
    // Predicated region
    $region26: #{tpu_custom_call.1} parent=1 // pred_check
      _
    $region27: #{tpu_custom_call.1} parent=1 // pred_check_branch
      %823 = sbr.rel (0) target = $region29
    $region28: #{tpu_custom_call.1} parent=1 // pred_region
      %s825 = ssub.s32 2048, 2048
      %826 = vsyncadd [#allocation4], %s825
      %s827 = sshll.u32 [#allocation7], 4
      %s828 = int_to_ptr.vmem [resolvable:$true] %s827
      %833 = dma.vmem_to_hbm [thread:$0]  %s828, 2048, %s4, [#allocation4], 128, 128, 8
    $region29: #{tpu_custom_call.1} parent=1 // pred_fallthru
      _
    // Predicated region
    $region30: #{tpu_custom_call.1} parent=1 // pred_check
      _
    $region31: #{tpu_custom_call.1} parent=1 // pred_check_branch
      %835 = sbr.rel (0) target = $region33
    $region32: #{tpu_custom_call.1} parent=1 // pred_region
      %836 = dma.done [#allocation4], 2048
    $region33: #{tpu_custom_call.1} parent=1 // pred_fallthru
      _
    %837 = vsyncpa [#allocation3], 1
    %838 = vsyncpa [#allocation6], 1
    %839 = vsyncpa [#allocation4], 1

</llo_original>
